<compile_context>
chip_gen: v7x
topology: tpu7x:2x2x1
jax: 0.10.0
libtpu: 0.0.40
codegen_flags: <defaults>
</compile_context>

<pallas_src>
import jax
import jax.numpy as jnp
from jax.experimental import pallas as pl
from jax.experimental.pallas import tpu as pltpu

F = 2  # input_features
M = 2  # num_membership_functions
# Rule enumeration exactly as in the PyTorch forward's nested loops.
RULES = tuple((i, m, j, n)
              for i in range(F) for m in range(M)
              for j in range(i + 1, F) for n in range(M))
R = len(RULES)  # = 4 for F == 2, M == 2


def anfis_kernel(mf_a_ref, mf_b_ref, mf_c_ref,   # SMEM: (F*M,) each
                 dzw_ref, dzb_ref,               # SMEM: (F*R,), (R,)
                 x_ref,                          # VMEM: (F, TILE_B)  batch on lanes
                 o_ref):                         # VMEM: (1, TILE_B)
    tile_b = o_ref.shape[1]
    x_rows = [x_ref[i:i + 1, :] for i in range(F)]          # each (1, TILE_B), lane-dense

    # --- fuzzification: evaluate each of the F*M unique bell MFs exactly once ---
    mu = []
    for i in range(F):
        mu_i = []
        for m in range(M):
            p = i * M + m
            a = mf_a_ref[p]
            b = mf_b_ref[p]
            c = mf_c_ref[p]
            inv_a = 1.0 / a                                  # scalar-side divide
            t = ((x_rows[i] - c) * inv_a) ** 2               # |(x-c)/a|^2  (>= 0)
            powed = jnp.where(t > 0.0,
                              jnp.exp(b * jnp.log(jnp.maximum(t, 1e-30))),
                              jnp.zeros_like(t))
            # approx EUP reciprocal: renormalized by w/sum(w) below
            mu_i.append(pl.reciprocal(1.0 + powed, approx=True))
        mu.append(mu_i)

    # --- rules + defuzzification + aggregation via running sums (no concat) ---
    num = jnp.zeros((1, tile_b), jnp.float32)
    den = jnp.zeros((1, tile_b), jnp.float32)
    for r, (i, m, j, n) in enumerate(RULES):
        w_r = mu[i][m] * mu[j][n]                            # product T-norm (1, TILE_B)
        f_r = dzb_ref[r]                                     # scalar consequent bias
        for q in range(F):                                   # f_r = sum_q W[q,r]*x_q + b_r
            f_r = f_r + dzw_ref[q * R + r] * x_rows[q]       # scalar-broadcast VPU FMA
        num = num + w_r * f_r
        den = den + w_r

    # normalization + aggregation:  sum_r (w_r/den) * f_r  ==  num / den
    o_ref[...] = num * pl.reciprocal(den, approx=True)


def anfis_forward(x, mf_a, mf_b, mf_c, dz_w, dz_b, *, tile_b=512):
    """x: (B, F) f32.  Returns (B, 1) f32."""
    B = x.shape[0]
    x_t = x.astype(jnp.float32).T                            # (F, B): batch -> lanes
    b_pad = pl.cdiv(B, tile_b) * tile_b
    if b_pad != B:
        x_t = jnp.pad(x_t, ((0, 0), (0, b_pad - B)))
    n_tiles = b_pad // tile_b

    dzw_flat = dz_w.astype(jnp.float32).reshape(-1)          # (F*R,) row-major: [q*R + r]
    dzb_flat = dz_b.astype(jnp.float32).reshape(-1)          # (R,)

    smem_spec = pl.BlockSpec(memory_space=pltpu.MemorySpace.SMEM)

    out = pl.pallas_call(
        anfis_kernel,
        out_shape=jax.ShapeDtypeStruct((1, b_pad), jnp.float32),
        grid_spec=pltpu.PrefetchScalarGridSpec(
            num_scalar_prefetch=0,
            grid=(n_tiles,),
            in_specs=[
                smem_spec,                                   # mf_a
                smem_spec,                                   # mf_b
                smem_spec,                                   # mf_c
                smem_spec,                                   # defuzz weights (flat)
                smem_spec,                                   # defuzz biases  (flat)
                pl.BlockSpec((F, tile_b), lambda t: (0, t)), # x tile, lane-dense
            ],
            out_specs=pl.BlockSpec((1, tile_b), lambda t: (0, t)),
        ),
        compiler_params=pltpu.CompilerParams(
            dimension_semantics=("parallel",)),
        cost_estimate=pl.CostEstimate(
            flops=60 * b_pad,
            transcendentals=13 * b_pad,
            bytes_accessed=12 * b_pad),
    )(mf_a, mf_b, mf_c, dzw_flat, dzb_flat, x_t)

    return out[0, :B].reshape(B, 1)


def anfis_reference(x, mf_a, mf_b, mf_c, dz_w, dz_b):
    """Plain-JAX reference mirroring the PyTorch forward."""
    def bell(v, a, b, c):
        return 1.0 / (1.0 + jnp.abs((v - c) / a) ** (2.0 * b))

    firing = []
    for (i, m, j, n) in RULES:
        mu1 = bell(x[:, i], mf_a[i * M + m], mf_b[i * M + m], mf_c[i * M + m])
        mu2 = bell(x[:, j], mf_a[j * M + n], mf_b[j * M + n], mf_c[j * M + n])
        firing.append(mu1 * mu2)
    w = jnp.stack(firing, axis=1)                       # (B, R)
    w_norm = w / jnp.sum(w, axis=1, keepdims=True)      # (B, R)
    f = x @ dz_w + dz_b                                 # (B, R)
    return jnp.sum(w_norm * f, axis=1, keepdims=True)   # (B, 1)


if __name__ == "__main__":
    key = jax.random.PRNGKey(0)
    k1, k2, k3 = jax.random.split(key, 3)

    B = 8
    x = jax.random.normal(k1, (B, F), dtype=jnp.float32)

    # Membership-function params (a, b, c) per (feature, mf), flattened to (F*M,).
    mf_a = jnp.full((F * M,), 1.5, dtype=jnp.float32)
    mf_b = jnp.full((F * M,), 2.0, dtype=jnp.float32)
    mf_c = jnp.array([-1.0, 1.0, -1.0, 1.0], dtype=jnp.float32)

    # Defuzzification Linear(F -> 1) per rule: weights packed as (F, R), bias (1, R).
    dz_w = (jax.random.normal(k2, (F, R), dtype=jnp.float32) * 0.5).astype(jnp.float32)
    dz_b = (jax.random.normal(k3, (1, R), dtype=jnp.float32) * 0.1).astype(jnp.float32)

    out = anfis_forward(x, mf_a, mf_b, mf_c, dz_w, dz_b)
    out = jax.block_until_ready(out)

    ref = anfis_reference(x, mf_a, mf_b, mf_c, dz_w, dz_b)
    assert out.shape == (B, 1)
    # approx (EUP) reciprocals -> slightly looser tolerance than exact divide
    assert jnp.allclose(out, ref, rtol=1e-2, atol=1e-3), (out, ref)

    print("KERNEL_OK")
</pallas_src>

<mosaic_0001>
module attributes {stable_mosaic.version = 11 : i64} {
  func.func @anfis_kernel(%arg0: i32, %arg1: memref<4xf32, #tpu.memory_space<smem>>, %arg2: memref<4xf32, #tpu.memory_space<smem>>, %arg3: memref<4xf32, #tpu.memory_space<smem>>, %arg4: memref<8xf32, #tpu.memory_space<smem>>, %arg5: memref<4xf32, #tpu.memory_space<smem>>, %arg6: memref<2x512xf32, #tpu.memory_space<vmem>>, %arg7: memref<1x512xf32, #tpu.memory_space<vmem>>) attributes {dimension_semantics = [#tpu.dimension_semantics<parallel>], iteration_bounds = array<i64: 1>, scalar_prefetch = 0 : i64, scratch_operands = 0 : i64, tpu.core_type = #tpu.core_type<tc>, window_params = [{transform_indices = @transform_0, window_bounds = array<i64: 4>}, {transform_indices = @transform_1, window_bounds = array<i64: 4>}, {transform_indices = @transform_2, window_bounds = array<i64: 4>}, {transform_indices = @transform_3, window_bounds = array<i64: 8>}, {transform_indices = @transform_4, window_bounds = array<i64: 4>}, {transform_indices = @transform_5, window_bounds = array<i64: 2, 512>}, {transform_indices = @transform_6, window_bounds = array<i64: 1, 512>}]} {
    %c0 = arith.constant 0 : index
    %c0_0 = arith.constant 0 : index
    %0 = vector.load %arg6[%c0, %c0_0] : memref<2x512xf32, #tpu.memory_space<vmem>>, vector<1x512xf32>
    %c1 = arith.constant 1 : index
    %c0_1 = arith.constant 0 : index
    %1 = vector.load %arg6[%c1, %c0_1] : memref<2x512xf32, #tpu.memory_space<vmem>>, vector<1x512xf32>
    %c0_2 = arith.constant 0 : index
    %2 = memref.load %arg1[%c0_2] : memref<4xf32, #tpu.memory_space<smem>>
    %c0_3 = arith.constant 0 : index
    %3 = memref.load %arg2[%c0_3] : memref<4xf32, #tpu.memory_space<smem>>
    %c0_4 = arith.constant 0 : index
    %4 = memref.load %arg3[%c0_4] : memref<4xf32, #tpu.memory_space<smem>>
    %cst = arith.constant 1.000000e+00 : f32
    %5 = arith.divf %cst, %2 : f32
    %6 = vector.broadcast %4 : f32 to vector<1x512xf32>
    %7 = arith.subf %0, %6 : vector<1x512xf32>
    %8 = vector.broadcast %5 : f32 to vector<1x512xf32>
    %9 = arith.mulf %7, %8 : vector<1x512xf32>
    %10 = arith.mulf %9, %9 : vector<1x512xf32>
    %cst_5 = arith.constant 0.000000e+00 : f32
    %11 = vector.broadcast %cst_5 : f32 to vector<1x512xf32>
    %12 = arith.cmpf ogt, %10, %11 : vector<1x512xf32>
    %cst_6 = arith.constant 1.000000e-30 : f32
    %13 = vector.broadcast %cst_6 : f32 to vector<1x512xf32>
    %14 = arith.maximumf %10, %13 : vector<1x512xf32>
    %15 = math.log %14 : vector<1x512xf32>
    %16 = vector.broadcast %3 : f32 to vector<1x512xf32>
    %17 = arith.mulf %16, %15 : vector<1x512xf32>
    %18 = math.exp %17 : vector<1x512xf32>
    %cst_7 = arith.constant 0.000000e+00 : f32
    %19 = vector.broadcast %cst_7 : f32 to vector<1x512xf32>
    %20 = arith.select %12, %18, %19 : vector<1x512xi1>, vector<1x512xf32>
    %cst_8 = arith.constant 1.000000e+00 : f32
    %21 = vector.broadcast %cst_8 : f32 to vector<1x512xf32>
    %22 = arith.addf %21, %20 : vector<1x512xf32>
    %23 = tpu.reciprocal %22 {approx = true} : vector<1x512xf32> -> vector<1x512xf32>
    %c1_9 = arith.constant 1 : index
    %24 = memref.load %arg1[%c1_9] : memref<4xf32, #tpu.memory_space<smem>>
    %c1_10 = arith.constant 1 : index
    %25 = memref.load %arg2[%c1_10] : memref<4xf32, #tpu.memory_space<smem>>
    %c1_11 = arith.constant 1 : index
    %26 = memref.load %arg3[%c1_11] : memref<4xf32, #tpu.memory_space<smem>>
    %cst_12 = arith.constant 1.000000e+00 : f32
    %27 = arith.divf %cst_12, %24 : f32
    %28 = vector.broadcast %26 : f32 to vector<1x512xf32>
    %29 = arith.subf %0, %28 : vector<1x512xf32>
    %30 = vector.broadcast %27 : f32 to vector<1x512xf32>
    %31 = arith.mulf %29, %30 : vector<1x512xf32>
    %32 = arith.mulf %31, %31 : vector<1x512xf32>
    %cst_13 = arith.constant 0.000000e+00 : f32
    %33 = vector.broadcast %cst_13 : f32 to vector<1x512xf32>
    %34 = arith.cmpf ogt, %32, %33 : vector<1x512xf32>
    %cst_14 = arith.constant 1.000000e-30 : f32
    %35 = vector.broadcast %cst_14 : f32 to vector<1x512xf32>
    %36 = arith.maximumf %32, %35 : vector<1x512xf32>
    %37 = math.log %36 : vector<1x512xf32>
    %38 = vector.broadcast %25 : f32 to vector<1x512xf32>
    %39 = arith.mulf %38, %37 : vector<1x512xf32>
    %40 = math.exp %39 : vector<1x512xf32>
    %cst_15 = arith.constant 0.000000e+00 : f32
    %41 = vector.broadcast %cst_15 : f32 to vector<1x512xf32>
    %42 = arith.select %34, %40, %41 : vector<1x512xi1>, vector<1x512xf32>
    %cst_16 = arith.constant 1.000000e+00 : f32
    %43 = vector.broadcast %cst_16 : f32 to vector<1x512xf32>
    %44 = arith.addf %43, %42 : vector<1x512xf32>
    %45 = tpu.reciprocal %44 {approx = true} : vector<1x512xf32> -> vector<1x512xf32>
    %c2 = arith.constant 2 : index
    %46 = memref.load %arg1[%c2] : memref<4xf32, #tpu.memory_space<smem>>
    %c2_17 = arith.constant 2 : index
    %47 = memref.load %arg2[%c2_17] : memref<4xf32, #tpu.memory_space<smem>>
    %c2_18 = arith.constant 2 : index
    %48 = memref.load %arg3[%c2_18] : memref<4xf32, #tpu.memory_space<smem>>
    %cst_19 = arith.constant 1.000000e+00 : f32
    %49 = arith.divf %cst_19, %46 : f32
    %50 = vector.broadcast %48 : f32 to vector<1x512xf32>
    %51 = arith.subf %1, %50 : vector<1x512xf32>
    %52 = vector.broadcast %49 : f32 to vector<1x512xf32>
    %53 = arith.mulf %51, %52 : vector<1x512xf32>
    %54 = arith.mulf %53, %53 : vector<1x512xf32>
    %cst_20 = arith.constant 0.000000e+00 : f32
    %55 = vector.broadcast %cst_20 : f32 to vector<1x512xf32>
    %56 = arith.cmpf ogt, %54, %55 : vector<1x512xf32>
    %cst_21 = arith.constant 1.000000e-30 : f32
    %57 = vector.broadcast %cst_21 : f32 to vector<1x512xf32>
    %58 = arith.maximumf %54, %57 : vector<1x512xf32>
    %59 = math.log %58 : vector<1x512xf32>
    %60 = vector.broadcast %47 : f32 to vector<1x512xf32>
    %61 = arith.mulf %60, %59 : vector<1x512xf32>
    %62 = math.exp %61 : vector<1x512xf32>
    %cst_22 = arith.constant 0.000000e+00 : f32
    %63 = vector.broadcast %cst_22 : f32 to vector<1x512xf32>
    %64 = arith.select %56, %62, %63 : vector<1x512xi1>, vector<1x512xf32>
    %cst_23 = arith.constant 1.000000e+00 : f32
    %65 = vector.broadcast %cst_23 : f32 to vector<1x512xf32>
    %66 = arith.addf %65, %64 : vector<1x512xf32>
    %67 = tpu.reciprocal %66 {approx = true} : vector<1x512xf32> -> vector<1x512xf32>
    %c3 = arith.constant 3 : index
    %68 = memref.load %arg1[%c3] : memref<4xf32, #tpu.memory_space<smem>>
    %c3_24 = arith.constant 3 : index
    %69 = memref.load %arg2[%c3_24] : memref<4xf32, #tpu.memory_space<smem>>
    %c3_25 = arith.constant 3 : index
    %70 = memref.load %arg3[%c3_25] : memref<4xf32, #tpu.memory_space<smem>>
    %cst_26 = arith.constant 1.000000e+00 : f32
    %71 = arith.divf %cst_26, %68 : f32
    %72 = vector.broadcast %70 : f32 to vector<1x512xf32>
    %73 = arith.subf %1, %72 : vector<1x512xf32>
    %74 = vector.broadcast %71 : f32 to vector<1x512xf32>
    %75 = arith.mulf %73, %74 : vector<1x512xf32>
    %76 = arith.mulf %75, %75 : vector<1x512xf32>
    %cst_27 = arith.constant 0.000000e+00 : f32
    %77 = vector.broadcast %cst_27 : f32 to vector<1x512xf32>
    %78 = arith.cmpf ogt, %76, %77 : vector<1x512xf32>
    %cst_28 = arith.constant 1.000000e-30 : f32
    %79 = vector.broadcast %cst_28 : f32 to vector<1x512xf32>
    %80 = arith.maximumf %76, %79 : vector<1x512xf32>
    %81 = math.log %80 : vector<1x512xf32>
    %82 = vector.broadcast %69 : f32 to vector<1x512xf32>
    %83 = arith.mulf %82, %81 : vector<1x512xf32>
    %84 = math.exp %83 : vector<1x512xf32>
    %cst_29 = arith.constant 0.000000e+00 : f32
    %85 = vector.broadcast %cst_29 : f32 to vector<1x512xf32>
    %86 = arith.select %78, %84, %85 : vector<1x512xi1>, vector<1x512xf32>
    %cst_30 = arith.constant 1.000000e+00 : f32
    %87 = vector.broadcast %cst_30 : f32 to vector<1x512xf32>
    %88 = arith.addf %87, %86 : vector<1x512xf32>
    %89 = tpu.reciprocal %88 {approx = true} : vector<1x512xf32> -> vector<1x512xf32>
    %cst_31 = arith.constant 0.000000e+00 : f32
    %90 = vector.broadcast %cst_31 : f32 to vector<1x512xf32>
    %cst_32 = arith.constant 0.000000e+00 : f32
    %91 = vector.broadcast %cst_32 : f32 to vector<1x512xf32>
    %92 = arith.mulf %23, %67 : vector<1x512xf32>
    %c0_33 = arith.constant 0 : index
    %93 = memref.load %arg5[%c0_33] : memref<4xf32, #tpu.memory_space<smem>>
    %c0_34 = arith.constant 0 : index
    %94 = memref.load %arg4[%c0_34] : memref<8xf32, #tpu.memory_space<smem>>
    %95 = vector.broadcast %94 : f32 to vector<1x512xf32>
    %96 = arith.mulf %95, %0 : vector<1x512xf32>
    %97 = vector.broadcast %93 : f32 to vector<1x512xf32>
    %98 = arith.addf %97, %96 : vector<1x512xf32>
    %c4 = arith.constant 4 : index
    %99 = memref.load %arg4[%c4] : memref<8xf32, #tpu.memory_space<smem>>
    %100 = vector.broadcast %99 : f32 to vector<1x512xf32>
    %101 = arith.mulf %100, %1 : vector<1x512xf32>
    %102 = arith.addf %98, %101 : vector<1x512xf32>
    %103 = arith.mulf %92, %102 : vector<1x512xf32>
    %104 = arith.addf %90, %103 : vector<1x512xf32>
    %105 = arith.addf %91, %92 : vector<1x512xf32>
    %106 = arith.mulf %23, %89 : vector<1x512xf32>
    %c1_35 = arith.constant 1 : index
    %107 = memref.load %arg5[%c1_35] : memref<4xf32, #tpu.memory_space<smem>>
    %c1_36 = arith.constant 1 : index
    %108 = memref.load %arg4[%c1_36] : memref<8xf32, #tpu.memory_space<smem>>
    %109 = vector.broadcast %108 : f32 to vector<1x512xf32>
    %110 = arith.mulf %109, %0 : vector<1x512xf32>
    %111 = vector.broadcast %107 : f32 to vector<1x512xf32>
    %112 = arith.addf %111, %110 : vector<1x512xf32>
    %c5 = arith.constant 5 : index
    %113 = memref.load %arg4[%c5] : memref<8xf32, #tpu.memory_space<smem>>
    %114 = vector.broadcast %113 : f32 to vector<1x512xf32>
    %115 = arith.mulf %114, %1 : vector<1x512xf32>
    %116 = arith.addf %112, %115 : vector<1x512xf32>
    %117 = arith.mulf %106, %116 : vector<1x512xf32>
    %118 = arith.addf %104, %117 : vector<1x512xf32>
    %119 = arith.addf %105, %106 : vector<1x512xf32>
    %120 = arith.mulf %45, %67 : vector<1x512xf32>
    %c2_37 = arith.constant 2 : index
    %121 = memref.load %arg5[%c2_37] : memref<4xf32, #tpu.memory_space<smem>>
    %c2_38 = arith.constant 2 : index
    %122 = memref.load %arg4[%c2_38] : memref<8xf32, #tpu.memory_space<smem>>
    %123 = vector.broadcast %122 : f32 to vector<1x512xf32>
    %124 = arith.mulf %123, %0 : vector<1x512xf32>
    %125 = vector.broadcast %121 : f32 to vector<1x512xf32>
    %126 = arith.addf %125, %124 : vector<1x512xf32>
    %c6 = arith.constant 6 : index
    %127 = memref.load %arg4[%c6] : memref<8xf32, #tpu.memory_space<smem>>
    %128 = vector.broadcast %127 : f32 to vector<1x512xf32>
    %129 = arith.mulf %128, %1 : vector<1x512xf32>
    %130 = arith.addf %126, %129 : vector<1x512xf32>
    %131 = arith.mulf %120, %130 : vector<1x512xf32>
    %132 = arith.addf %118, %131 : vector<1x512xf32>
    %133 = arith.addf %119, %120 : vector<1x512xf32>
    %134 = arith.mulf %45, %89 : vector<1x512xf32>
    %c3_39 = arith.constant 3 : index
    %135 = memref.load %arg5[%c3_39] : memref<4xf32, #tpu.memory_space<smem>>
    %c3_40 = arith.constant 3 : index
    %136 = memref.load %arg4[%c3_40] : memref<8xf32, #tpu.memory_space<smem>>
    %137 = vector.broadcast %136 : f32 to vector<1x512xf32>
    %138 = arith.mulf %137, %0 : vector<1x512xf32>
    %139 = vector.broadcast %135 : f32 to vector<1x512xf32>
    %140 = arith.addf %139, %138 : vector<1x512xf32>
    %c7 = arith.constant 7 : index
    %141 = memref.load %arg4[%c7] : memref<8xf32, #tpu.memory_space<smem>>
    %142 = vector.broadcast %141 : f32 to vector<1x512xf32>
    %143 = arith.mulf %142, %1 : vector<1x512xf32>
    %144 = arith.addf %140, %143 : vector<1x512xf32>
    %145 = arith.mulf %134, %144 : vector<1x512xf32>
    %146 = arith.addf %132, %145 : vector<1x512xf32>
    %147 = arith.addf %133, %134 : vector<1x512xf32>
    %148 = tpu.reciprocal %147 {approx = true} : vector<1x512xf32> -> vector<1x512xf32>
    %149 = arith.mulf %146, %148 : vector<1x512xf32>
    %c0_41 = arith.constant 0 : index
    %c0_42 = arith.constant 0 : index
    %150 = vector.load %arg7[%c0_41, %c0_42] : memref<1x512xf32, #tpu.memory_space<vmem>>, vector<1x512xf32>
    tpu.vector_store %arg7[%c0_41, %c0_42], %149 {strides = array<i32>} : memref<1x512xf32, #tpu.memory_space<vmem>>, vector<1x512xf32>,
    return
  }
  func.func @transform_0(%arg0: i32) -> i32 {
    %c0_i32 = arith.constant 0 : i32
    %c0_i32_0 = arith.constant 0 : i32
    return %c0_i32 : i32
  }
  func.func @transform_1(%arg0: i32) -> i32 {
    %c0_i32 = arith.constant 0 : i32
    %c0_i32_0 = arith.constant 0 : i32
    return %c0_i32 : i32
  }
  func.func @transform_2(%arg0: i32) -> i32 {
    %c0_i32 = arith.constant 0 : i32
    %c0_i32_0 = arith.constant 0 : i32
    return %c0_i32 : i32
  }
  func.func @transform_3(%arg0: i32) -> i32 {
    %c0_i32 = arith.constant 0 : i32
    %c0_i32_0 = arith.constant 0 : i32
    return %c0_i32 : i32
  }
  func.func @transform_4(%arg0: i32) -> i32 {
    %c0_i32 = arith.constant 0 : i32
    %c0_i32_0 = arith.constant 0 : i32
    return %c0_i32 : i32
  }
  func.func @transform_5(%arg0: i32) -> (i32, i32) {
    %c0_i32 = arith.constant 0 : i32
    %c0_i32_0 = arith.constant 0 : i32
    return %c0_i32, %arg0 : i32, i32
  }
  func.func @transform_6(%arg0: i32) -> (i32, i32) {
    %c0_i32 = arith.constant 0 : i32
    %c0_i32_0 = arith.constant 0 : i32
    return %c0_i32, %arg0 : i32, i32
  }
}

</mosaic_0001>

<llo_original>
// kernel: tpu_custom_call.1
$region0: #{tpu_custom_call.1}
  #allocation0 [shape = 'u32[]', space=smem, size = 0x4, offset = 0x4, fixed_abs, tag = 'smem constant byte address 0x4 - core index']
  #allocation1 [shape = 'u32[144,128]{1,0:T(1,128)}', space=vmem, size = 0x12000, scoped, tag = 'internal scratch']
  %s0 = inlined_call_operand.hbm [shape: f32[4], index: 0, kind: input, shape index: {}]
  %s1 = inlined_call_operand.vmem [shape: f32[4], index: 1, kind: input, shape index: {}]
  %s2 = inlined_call_operand.vmem [shape: f32[4], index: 2, kind: input, shape index: {}]
  %s3 = inlined_call_operand.vmem [shape: f32[8], index: 3, kind: input, shape index: {}]
  %s4 = inlined_call_operand.vmem [shape: f32[4], index: 4, kind: input, shape index: {}]
  %s5 = inlined_call_operand.vmem [shape: f32[2,512], index: 5, kind: input, shape index: {}]
  %s6 = inlined_call_operand.hbm [shape: f32[1,512], index: 6, kind: output, shape index: {}]
  %s7 = sld [smem:[#allocation0]]
  $region54: #{tpu_custom_call.1} parent=0
    _
  %s9 = ssub.s32 1, %s7
  %s10 = scalar_select 0, %s9, %s7
  $region1: #{tpu_custom_call.1} parent=0
    #allocation2 [shape = 'u8[512]{0}', space=smem, size = 0x200, scoped, tag = 'input window, operand 0, single buffered']
    #allocation3 [shape = 's32[1]{0}', space=sflag, size = 0x4, scoped, tag = 'scoped memory for tpu_custom_call.1']
    #allocation4 [shape = 's32[1]{0}', space=sflag, size = 0x4, scoped, tag = 'scoped memory for tpu_custom_call.1']
    #allocation5 [shape = 's32[1]{0}', space=sflag, size = 0x4, scoped, tag = 'scoped memory for tpu_custom_call.1']
    #allocation6 [shape = 'u8[512]{0}', space=smem, size = 0x200, scoped, tag = 'input window, operand 1, single buffered']
    #allocation7 [shape = 'u8[512]{0}', space=smem, size = 0x200, scoped, tag = 'input window, operand 2, single buffered']
    #allocation8 [shape = 's32[1]{0}', space=sflag, size = 0x4, scoped, tag = 'scoped memory for tpu_custom_call.1']
    #allocation9 [shape = 'u8[512]{0}', space=smem, size = 0x200, scoped, tag = 'input window, operand 3, single buffered']
    #allocation10 [shape = 'u8[512]{0}', space=smem, size = 0x200, scoped, tag = 'input window, operand 4, single buffered']
    #allocation11 [shape = 's32[1]{0}', space=sflag, size = 0x4, scoped, tag = 'scoped memory for tpu_custom_call.1']
    #allocation12 [shape = 'u8[2048]{0}', space=vmem, size = 0x800, scoped, tag = 'output window, operand 0, single buffered']
    %11 = vsyncpa [#allocation4], 0
    %12 = vsyncpa [#allocation5], 0
    %13 = vsyncpa [#allocation8], 0
    %14 = vsyncpa [#allocation11], 0
    %15 = vsyncpa [#allocation3], 0
    // Predicated region
    $region2: #{tpu_custom_call.1} parent=1 // pred_check
      _
    $region3: #{tpu_custom_call.1} parent=1 // pred_check_branch
      %17 = sbr.rel (0) target = $region5
    $region4: #{tpu_custom_call.1} parent=1 // pred_region
      %s19 = ssub.s32 16, 16
      %20 = vsyncadd [#allocation4], %s19
      %23 = dma.hbm_to_smem %s0, 16, [#allocation2], [#allocation4]
    $region5: #{tpu_custom_call.1} parent=1 // pred_fallthru
      _
    // Predicated region
    $region6: #{tpu_custom_call.1} parent=1 // pred_check
      _
    $region7: #{tpu_custom_call.1} parent=1 // pred_check_branch
      %25 = sbr.rel (0) target = $region9
    $region8: #{tpu_custom_call.1} parent=1 // pred_region
      %s27 = ssub.s32 16, 16
      %28 = vsyncadd [#allocation5], %s27
      %s30 = sshll.u32 %s1, 4
      %s31 = int_to_ptr.vmem [resolvable:$true] %s30
      %33 = dma.vmem_to_smem %s31, 16, [#allocation6], [#allocation5]
    $region9: #{tpu_custom_call.1} parent=1 // pred_fallthru
      _
    // Predicated region
    $region10: #{tpu_custom_call.1} parent=1 // pred_check
      _
    $region11: #{tpu_custom_call.1} parent=1 // pred_check_branch
      %35 = sbr.rel (0) target = $region13
    $region12: #{tpu_custom_call.1} parent=1 // pred_region
      %s37 = ssub.s32 16, 16
      %38 = vsyncadd [#allocation8], %s37
      %s40 = sshll.u32 %s2, 4
      %s41 = int_to_ptr.vmem [resolvable:$true] %s40
      %43 = dma.vmem_to_smem %s41, 16, [#allocation7], [#allocation8]
    $region13: #{tpu_custom_call.1} parent=1 // pred_fallthru
      _
    // Predicated region
    $region14: #{tpu_custom_call.1} parent=1 // pred_check
      _
    $region15: #{tpu_custom_call.1} parent=1 // pred_check_branch
      %45 = sbr.rel (0) target = $region17
    $region16: #{tpu_custom_call.1} parent=1 // pred_region
      %s47 = ssub.s32 16, 16
      %48 = vsyncadd [#allocation8], %s47
      %s50 = sshll.u32 %s3, 4
      %s51 = int_to_ptr.vmem [resolvable:$true] %s50
      %53 = dma.vmem_to_smem %s51, 16, [#allocation9], [#allocation8]
    $region17: #{tpu_custom_call.1} parent=1 // pred_fallthru
      _
    // Predicated region
    $region18: #{tpu_custom_call.1} parent=1 // pred_check
      _
    $region19: #{tpu_custom_call.1} parent=1 // pred_check_branch
      %55 = sbr.rel (0) target = $region21
    $region20: #{tpu_custom_call.1} parent=1 // pred_region
      %s57 = ssub.s32 16, 16
      %58 = vsyncadd [#allocation11], %s57
      %s60 = sshll.u32 %s4, 4
      %s61 = int_to_ptr.vmem [resolvable:$true] %s60
      %63 = dma.vmem_to_smem %s61, 16, [#allocation10], [#allocation11]
    $region21: #{tpu_custom_call.1} parent=1 // pred_fallthru
      _
    // Predicated region
    $region22: #{tpu_custom_call.1} parent=1 // pred_check
      _
    $region23: #{tpu_custom_call.1} parent=1 // pred_check_branch
      %65 = sbr.rel (0) target = $region25
    $region24: #{tpu_custom_call.1} parent=1 // pred_region
      _
    $region25: #{tpu_custom_call.1} parent=1 // pred_fallthru
      _
    // Predicated region
    $region26: #{tpu_custom_call.1} parent=1 // pred_check
      _
    $region27: #{tpu_custom_call.1} parent=1 // pred_check_branch
      %67 = sbr.rel (0) target = $region29
    $region28: #{tpu_custom_call.1} parent=1 // pred_region
      %68 = dma.done [#allocation4], 16
    $region29: #{tpu_custom_call.1} parent=1 // pred_fallthru
      _
    // Predicated region
    $region30: #{tpu_custom_call.1} parent=1 // pred_check
      _
    $region31: #{tpu_custom_call.1} parent=1 // pred_check_branch
      %70 = sbr.rel (0) target = $region33
    $region32: #{tpu_custom_call.1} parent=1 // pred_region
      %71 = dma.done [#allocation5], 16
    $region33: #{tpu_custom_call.1} parent=1 // pred_fallthru
      _
    // Predicated region
    $region34: #{tpu_custom_call.1} parent=1 // pred_check
      _
    $region35: #{tpu_custom_call.1} parent=1 // pred_check_branch
      %73 = sbr.rel (0) target = $region37
    $region36: #{tpu_custom_call.1} parent=1 // pred_region
      %74 = dma.done [#allocation8], 16
    $region37: #{tpu_custom_call.1} parent=1 // pred_fallthru
      _
    // Predicated region
    $region38: #{tpu_custom_call.1} parent=1 // pred_check
      _
    $region39: #{tpu_custom_call.1} parent=1 // pred_check_branch
      %76 = sbr.rel (0) target = $region41
    $region40: #{tpu_custom_call.1} parent=1 // pred_region
      %77 = dma.done [#allocation8], 16
    $region41: #{tpu_custom_call.1} parent=1 // pred_fallthru
      _
    // Predicated region
    $region42: #{tpu_custom_call.1} parent=1 // pred_check
      _
    $region43: #{tpu_custom_call.1} parent=1 // pred_check_branch
      %79 = sbr.rel (0) target = $region45
    $region44: #{tpu_custom_call.1} parent=1 // pred_region
      %80 = dma.done [#allocation11], 16
    $region45: #{tpu_custom_call.1} parent=1 // pred_fallthru
      _
    %81 = sfence
    %v82 = vld [vmem:[%s5] ss:$2 sm:$0xf]
    %s83 = scalar_lea.vmem %s5, 1
    %v84 = vld [vmem:[%s83] ss:$2 sm:$0xf]
    %s85 = sld [smem:[#allocation2]]
    %s86 = sld [smem:[#allocation6]]
    %s87 = sld [smem:[#allocation7]]
    %v88 = vstv %s85
    %v89 = vrcp.pop %v88
    %s90 = vtos %v89
    %v91 = vstv %s87
    %v92 = vsub.f32 %v82, %v91
    %v93 = vstv %s90
    %v94 = vmul.f32 %v92, %v93
    %v95 = vmul.f32 %v94, %v94
    %vm96 = vcmp.gt.f32.partialorder %v95, 0.0
    %v97 = vmax.f32 %v95, 1e-30
    %v98 = vlog2.pop %v97
    %v99 = vmul.f32 %v98, 0.6931472
    %v100 = vstv %s86
    %v101 = vmul.f32 %v100, %v99
    %v102 = vmul.f32 %v101, 1.442695
    %v103 = vpow.pop %v102
    %v104 = vsel %vm96, %v103, 0.0
    %v105 = vadd.f32 %v104, 1.0
    %v106 = vrcp.pop %v105
    %s107 = sld [smem:[#allocation2 + $0x1]]
    %s108 = sld [smem:[#allocation6 + $0x1]]
    %s109 = sld [smem:[#allocation7 + $0x1]]
    %v110 = vstv %s107
    %v111 = vrcp.pop %v110
    %s112 = vtos %v111
    %v113 = vstv %s109
    %v114 = vsub.f32 %v82, %v113
    %v115 = vstv %s112
    %v116 = vmul.f32 %v114, %v115
    %v117 = vmul.f32 %v116, %v116
    %vm118 = vcmp.gt.f32.partialorder %v117, 0.0
    %v119 = vmax.f32 %v117, 1e-30
    %v120 = vlog2.pop %v119
    %v121 = vmul.f32 %v120, 0.6931472
    %v122 = vstv %s108
    %v123 = vmul.f32 %v122, %v121
    %v124 = vmul.f32 %v123, 1.442695
    %v125 = vpow.pop %v124
    %v126 = vsel %vm118, %v125, 0.0
    %v127 = vadd.f32 %v126, 1.0
    %v128 = vrcp.pop %v127
    %s129 = sld [smem:[#allocation2 + $0x2]]
    %s130 = sld [smem:[#allocation6 + $0x2]]
    %s131 = sld [smem:[#allocation7 + $0x2]]
    %v132 = vstv %s129
    %v133 = vrcp.pop %v132
    %s134 = vtos %v133
    %v135 = vstv %s131
    %v136 = vsub.f32 %v84, %v135
    %v137 = vstv %s134
    %v138 = vmul.f32 %v136, %v137
    %v139 = vmul.f32 %v138, %v138
    %vm140 = vcmp.gt.f32.partialorder %v139, 0.0
    %v141 = vmax.f32 %v139, 1e-30
    %v142 = vlog2.pop %v141
    %v143 = vmul.f32 %v142, 0.6931472
    %v144 = vstv %s130
    %v145 = vmul.f32 %v144, %v143
    %v146 = vmul.f32 %v145, 1.442695
    %v147 = vpow.pop %v146
    %v148 = vsel %vm140, %v147, 0.0
    %v149 = vadd.f32 %v148, 1.0
    %v150 = vrcp.pop %v149
    %s151 = sld [smem:[#allocation2 + $0x3]]
    %s152 = sld [smem:[#allocation6 + $0x3]]
    %s153 = sld [smem:[#allocation7 + $0x3]]
    %v154 = vstv %s151
    %v155 = vrcp.pop %v154
    %s156 = vtos %v155
    %v157 = vstv %s153
    %v158 = vsub.f32 %v84, %v157
    %v159 = vstv %s156
    %v160 = vmul.f32 %v158, %v159
    %v161 = vmul.f32 %v160, %v160
    %vm162 = vcmp.gt.f32.partialorder %v161, 0.0
    %v163 = vmax.f32 %v161, 1e-30
    %v164 = vlog2.pop %v163
    %v165 = vmul.f32 %v164, 0.6931472
    %v166 = vstv %s152
    %v167 = vmul.f32 %v166, %v165
    %v168 = vmul.f32 %v167, 1.442695
    %v169 = vpow.pop %v168
    %v170 = vsel %vm162, %v169, 0.0
    %v171 = vadd.f32 %v170, 1.0
    %v172 = vrcp.pop %v171
    %v173 = vmul.f32 %v106, %v150
    %s174 = sld [smem:[#allocation10]]
    %s175 = sld [smem:[#allocation9]]
    %v176 = vstv %s175
    %v177 = vmul.f32 %v176, %v82
    %v178 = vstv %s174
    %v179 = vadd.f32 %v178, %v177
    %s180 = sld [smem:[#allocation9 + $0x4]]
    %v181 = vstv %s180
    %v182 = vmul.f32 %v181, %v84
    %v183 = vadd.f32 %v179, %v182
    %v184 = vmul.f32 %v173, %v183
    %v185 = vadd.f32 %v184, 0.0
    %v186 = vadd.f32 %v173, 0.0
    %v187 = vmul.f32 %v106, %v172
    %s188 = sld [smem:[#allocation10 + $0x1]]
    %s189 = sld [smem:[#allocation9 + $0x1]]
    %v190 = vstv %s189
    %v191 = vmul.f32 %v190, %v82
    %v192 = vstv %s188
    %v193 = vadd.f32 %v192, %v191
    %s194 = sld [smem:[#allocation9 + $0x5]]
    %v195 = vstv %s194
    %v196 = vmul.f32 %v195, %v84
    %v197 = vadd.f32 %v193, %v196
    %v198 = vmul.f32 %v187, %v197
    %v199 = vadd.f32 %v185, %v198
    %v200 = vadd.f32 %v186, %v187
    %v201 = vmul.f32 %v128, %v150
    %s202 = sld [smem:[#allocation10 + $0x2]]
    %s203 = sld [smem:[#allocation9 + $0x2]]
    %v204 = vstv %s203
    %v205 = vmul.f32 %v204, %v82
    %v206 = vstv %s202
    %v207 = vadd.f32 %v206, %v205
    %s208 = sld [smem:[#allocation9 + $0x6]]
    %v209 = vstv %s208
    %v210 = vmul.f32 %v209, %v84
    %v211 = vadd.f32 %v207, %v210
    %v212 = vmul.f32 %v201, %v211
    %v213 = vadd.f32 %v199, %v212
    %v214 = vadd.f32 %v200, %v201
    %v215 = vmul.f32 %v128, %v172
    %s216 = sld [smem:[#allocation10 + $0x3]]
    %s217 = sld [smem:[#allocation9 + $0x3]]
    %v218 = vstv %s217
    %v219 = vmul.f32 %v218, %v82
    %v220 = vstv %s216
    %v221 = vadd.f32 %v220, %v219
    %s222 = sld [smem:[#allocation9 + $0x7]]
    %v223 = vstv %s222
    %v224 = vmul.f32 %v223, %v84
    %v225 = vadd.f32 %v221, %v224
    %v226 = vmul.f32 %v215, %v225
    %v227 = vadd.f32 %v213, %v226
    %v228 = vadd.f32 %v214, %v215
    %v229 = vrcp.pop %v228
    %v230 = vmul.f32 %v227, %v229
    %v231 = vlaneseq
    %vm232 = vcmp.ge.s32.totalorder %v231, 0
    %vm233 = vcmp.lt.s32.totalorder %v231, 512
    %vm234 = vmand %vm232, %vm233
    %235 = vst.msk [vmem:[#allocation12] sm:$0xf] %vm234, %v230
    // Predicated region
    $region46: #{tpu_custom_call.1} parent=1 // pred_check
      _
    $region47: #{tpu_custom_call.1} parent=1 // pred_check_branch
      %237 = sbr.rel (0) target = $region49
    $region48: #{tpu_custom_call.1} parent=1 // pred_region
      %s239 = ssub.s32 64, 64
      %240 = vsyncadd [#allocation3], %s239
      %s242 = sshll.u32 [#allocation12], 4
      %s243 = int_to_ptr.vmem [resolvable:$true] %s242
      %245 = dma.vmem_to_hbm [thread:$0]  %s243, 64, %s6, [#allocation3]
    $region49: #{tpu_custom_call.1} parent=1 // pred_fallthru
      _
    // Predicated region
    $region50: #{tpu_custom_call.1} parent=1 // pred_check
      _
    $region51: #{tpu_custom_call.1} parent=1 // pred_check_branch
      %247 = sbr.rel (0) target = $region53
    $region52: #{tpu_custom_call.1} parent=1 // pred_region
      %248 = dma.done [#allocation3], 64
    $region53: #{tpu_custom_call.1} parent=1 // pred_fallthru
      _
    %249 = vsyncpa [#allocation3], 1
    %250 = vsyncpa [#allocation4], 1
    %251 = vsyncpa [#allocation5], 1
    %252 = vsyncpa [#allocation8], 1
    %253 = vsyncpa [#allocation11], 1

</llo_original>
